<compile_context>
chip_gen: v6e
topology: v6e:2x2x1
jax: 0.10.0
libtpu: 0.0.40
codegen_flags: <defaults>
</compile_context>

<pallas_src>
import numpy as np

import jax
import jax.numpy as jnp
from jax.experimental import pallas as pl
from jax.experimental.pallas import tpu as pltpu

# --------------------------- config (consistent with the module) ----------------------
B = 2                 # batch
K = 4                 # target_dim
L = 8                 # sequence length
TIME_EMB = 16         # emb_time_dim (even)
FEAT_EMB = 8          # emb_feature_dim
NEWS_EMB = 4          # news_embed_dim
WITH_NEWS = True
IS_UNCOND = 0         # conditional model only (matches default CSDI usage)
NUM_STEPS = 10
BETA_START = 1e-4
BETA_END = 0.5
HIDDEN = 32           # hidden width of the surrogate diffusion model

SIDE_DIM = TIME_EMB + FEAT_EMB + (NEWS_EMB if WITH_NEWS else 0) + (0 if IS_UNCOND else 1)  # 29
IN_DIM = 1 if IS_UNCOND else 2
CIN = IN_DIM + SIDE_DIM + 1          # [cond_obs, noisy_target, side(29), t/num_steps] -> 32
assert not IS_UNCOND                 # kernel implements the conditional branch

R = K * L                            # rows per batch in channels-last layout
DPACK = 4 + NEWS_EMB                 # packed data channels: [obs, noise, cond_mask, obs_mask, news*4]
WROWS = 16                           # packed weight rows (padded to a sublane multiple)
W2_ROW = DPACK                       # row of the packed weights holding the used W2 column

# ----------------------------- diffusion schedule ('quad') ---------------------------
_beta = np.linspace(np.sqrt(BETA_START), np.sqrt(BETA_END), NUM_STEPS) ** 2
_alpha = np.cumprod(1.0 - _beta)
SQRT_ALPHA = jnp.asarray(np.sqrt(_alpha), dtype=jnp.float32)             # (NUM_STEPS,)
SQRT_1M_ALPHA = jnp.asarray(np.sqrt(1.0 - _alpha), dtype=jnp.float32)    # (NUM_STEPS,)


# =============================== fused Pallas kernel ==================================
def _fused_loss_kernel(scal_ref,     # SMEM (B, 4) f32: [sqrt(a_t), sqrt(1-a_t), b2, 0]
                       data_ref,     # VMEM (B, R, DPACK) f32: [obs, noise, cm, om, news*4]
                       timebh_ref,   # VMEM (B, L, H) f32: time_emb@W1_time + (t/T)*W1_t + b1
                       feath_ref,    # VMEM (K, H) f32:    feature_emb@W1_feat
                       wpack_ref,    # VMEM (WROWS, H) f32: [w_obs, w_tgt, w_mask, 0, w_news*4, w2, 0-pad]
                       out_ref):     # VMEM (1, 1) f32: masked-MSE loss
    w_in = wpack_ref[0:DPACK, :]                       # (DPACK, H) -- single packed dot operand
    w2row = wpack_ref[W2_ROW:W2_ROW + 1, :]            # (1, H)     -- used output column of W2
    b2 = scal_ref[0, 2]

    # feature-embedding hidden bias expanded over L (batch independent; row index = k*L + l)
    feat_rows = jnp.concatenate(
        [jnp.broadcast_to(feath_ref[k:k + 1, :], (L, HIDDEN)) for k in range(K)], axis=0)

    lane = jax.lax.broadcasted_iota(jnp.int32, (R, DPACK), 1)

    ssq = jnp.float32(0.0)
    smask = jnp.float32(0.0)
    for b in range(B):                                 # static unroll (B = 2)
        sa = scal_ref[b, 0]                            # sqrt(alpha_t)
        sb = scal_ref[b, 1]                            # sqrt(1 - alpha_t)
        d = data_ref[b]                                # (R, DPACK)
        obs, noise = d[:, 0:1], d[:, 1:2]
        cm, om = d[:, 2:3], d[:, 3:4]

        # calc_loss noising + set_input_to_diffmodel, fully in-register
        cond_obs = cm * obs
        noisy_tgt = (1.0 - cm) * (sa * obs + sb * noise)

        # replace channels 0/1 of the packed data with the computed model inputs; channel
        # layout then matches the wpack rows [cond_obs, noisy_tgt, mask, om(0-weight), news*4]
        x = jnp.where(lane == 0, cond_obs, jnp.where(lane == 1, noisy_tgt, d))

        # surrogate diffusion model: pointwise 2-layer MLP over channels, one packed dot
        h = jnp.dot(x, w_in, preferred_element_type=jnp.float32)         # (R, H)
        hb = jnp.concatenate([timebh_ref[b]] * K, axis=0) + feat_rows    # (R, H) hidden bias
        h = jnp.maximum(h + hb, 0.0)
        pred = jnp.sum(h * w2row, axis=-1, keepdims=True) + b2           # (R, 1)

        # masked-MSE partial sums (target_mask = observed_mask - cond_mask)
        tmask = om - cm
        res = (noise - pred) * tmask
        ssq = ssq + jnp.sum(res * res)
        smask = smask + jnp.sum(tmask)

    denom = jnp.where(smask > 0, smask, jnp.float32(1.0))
    out_ref[...] = (ssq / denom)[None, None]


# ================================ JAX wrappers ========================================
def time_embedding(position, dim):
    """(B, L) timestamps -> (B, L, dim); pe[..., 0::2]=sin, pe[..., 1::2]=cos."""
    div_term = 1.0 / jnp.power(jnp.float32(10000.0),
                               jnp.arange(0, dim, 2, dtype=jnp.float32) / dim)
    table = position.astype(jnp.float32)[..., None] * div_term                 # (B, L, dim/2)
    emb = jnp.stack([jnp.sin(table), jnp.cos(table)], axis=-1)                 # interleave
    return emb.reshape(position.shape[0], position.shape[1], dim)


def get_randmask(key, observed_mask):
    """Random conditioning mask (single-sort threshold version of the torch topk scheme).
    RNG differs from torch's np/torch generators; distributionally equivalent."""
    Bm = observed_mask.shape[0]
    k1, k2 = jax.random.split(key)
    rand_for_mask = jax.random.uniform(k1, observed_mask.shape, dtype=jnp.float32) * observed_mask
    flat = rand_for_mask.reshape(Bm, -1)
    sample_ratio = jax.random.uniform(k2, (Bm,))
    num_observed = observed_mask.reshape(Bm, -1).sum(axis=1)
    num_masked = jnp.round(num_observed * sample_ratio).astype(jnp.int32)
    sorted_desc = jnp.sort(flat, axis=1)[:, ::-1]
    idx = jnp.clip(num_masked - 1, 0, flat.shape[1] - 1)
    kth = jnp.take_along_axis(sorted_desc, idx[:, None], axis=1)[:, 0]
    thresh = jnp.where(num_masked > 0, kth, jnp.inf)
    cond = (flat > 0) & (flat < thresh[:, None])
    return cond.astype(jnp.float32).reshape(observed_mask.shape)


def _split_w1(w1):
    """Split the surrogate W1 (CIN, H) by input-channel group
    (channel order: [cond_obs, noisy_target, time, feat, news, mask, t/num_steps])."""
    w1_obs, w1_tgt = w1[0], w1[1]
    o = IN_DIM
    w1_time = w1[o:o + TIME_EMB]; o += TIME_EMB
    w1_feat = w1[o:o + FEAT_EMB]; o += FEAT_EMB
    w1_news = w1[o:o + NEWS_EMB]; o += NEWS_EMB
    w1_mask = w1[o]; o += 1
    w1_t = w1[o]
    return w1_obs, w1_tgt, w1_time, w1_feat, w1_news, w1_mask, w1_t


def calc_loss_pallas(key, observed_data, cond_mask, observed_mask, observed_news,
                     time_embed, params, is_train=True, set_t=0):
    kt, kn = jax.random.split(key)
    if is_train:
        t = jax.random.randint(kt, (B,), 0, NUM_STEPS)
    else:
        t = jnp.full((B,), set_t, dtype=jnp.int32)
    noise = jax.random.normal(kn, observed_data.shape, dtype=jnp.float32)

    w1_obs, w1_tgt, w1_time, w1_feat, w1_news, w1_mask, w1_t = _split_w1(params["w1"])

    # tiny hidden-space side tables (replace the (B, K, L, SIDE_DIM) side_info HBM tensor)
    tn = t.astype(jnp.float32) / NUM_STEPS
    timebh = (jnp.einsum("bld,dh->blh", time_embed, w1_time)
              + tn[:, None, None] * w1_t[None, None, :]
              + params["b1"][None, None, :])                                  # (B, L, H)
    feath = params["feature_embed"] @ w1_feat                                 # (K, H)

    # one packed weight table: rows [w_obs, w_tgt, w_mask, 0(om), w_news*4, w2_col0, 0-pad]
    wpack = jnp.zeros((WROWS, HIDDEN), jnp.float32)
    wpack = wpack.at[0].set(w1_obs).at[1].set(w1_tgt).at[2].set(w1_mask)
    wpack = wpack.at[4:4 + NEWS_EMB].set(w1_news)
    wpack = wpack.at[W2_ROW].set(params["w2_col0"])

    # one packed, lane-dense per-row data tensor (replaces 4 width-1 columns + bf16 side blob)
    data = jnp.concatenate(
        [observed_data[..., None], noise[..., None],
         cond_mask[..., None], observed_mask[..., None], observed_news],
        axis=-1).reshape(B, R, DPACK)

    # per-batch schedule scalars (SMEM): [sqrt(alpha_t), sqrt(1-alpha_t), b2, 0]
    scal = jnp.stack([SQRT_ALPHA[t], SQRT_1M_ALPHA[t],
                      jnp.broadcast_to(params["b2"], (B,)).astype(jnp.float32),
                      jnp.zeros((B,), jnp.float32)], axis=1)

    # Single grid point: at B=2, K=4, L=8 per-grid-step overhead dominates on every chip.
    # TODO(synk): on v7x with much larger K*L, re-introduce a "parallel" batch grid axis so the
    # two TensorCores split the work; keep the single-program form for single-TC chips.
    loss = pl.pallas_call(
        _fused_loss_kernel,
        out_shape=jax.ShapeDtypeStruct((1, 1), jnp.float32),
        in_specs=[pl.BlockSpec(memory_space=pltpu.MemorySpace.SMEM),
                  pl.BlockSpec(memory_space=pltpu.MemorySpace.VMEM),
                  pl.BlockSpec(memory_space=pltpu.MemorySpace.VMEM),
                  pl.BlockSpec(memory_space=pltpu.MemorySpace.VMEM),
                  pl.BlockSpec(memory_space=pltpu.MemorySpace.VMEM)],
        out_specs=pl.BlockSpec(memory_space=pltpu.MemorySpace.VMEM),
    )(scal, data, timebh, feath, wpack)
    return loss[0, 0]


def calc_loss_reference(key, observed_data, cond_mask, observed_mask, observed_news,
                        time_embed, params, is_train=True, set_t=0):
    """Pure-jnp reference, built like the torch module (full side_info / channel concat)."""
    kt, kn = jax.random.split(key)
    if is_train:
        t = jax.random.randint(kt, (B,), 0, NUM_STEPS)
    else:
        t = jnp.full((B,), set_t, dtype=jnp.int32)
    noise = jax.random.normal(kn, observed_data.shape, dtype=jnp.float32)
    sa = SQRT_ALPHA[t][:, None, None]
    sb = SQRT_1M_ALPHA[t][:, None, None]
    noisy = sa * observed_data + sb * noise
    cond_obs = cond_mask * observed_data
    noisy_tgt = (1.0 - cond_mask) * noisy
    side = jnp.concatenate(
        [jnp.broadcast_to(time_embed[:, None, :, :], (B, K, L, TIME_EMB)),
         jnp.broadcast_to(params["feature_embed"][None, :, None, :], (B, K, L, FEAT_EMB)),
         observed_news,
         cond_mask[..., None]], axis=-1)                                       # (B,K,L,SIDE_DIM)
    tnc = jnp.broadcast_to((t.astype(jnp.float32) / NUM_STEPS)[:, None, None, None],
                           (B, K, L, 1))
    full_in = jnp.concatenate([cond_obs[..., None], noisy_tgt[..., None], side, tnc],
                              axis=-1)                                         # (B,K,L,CIN)
    h = jnp.maximum(jnp.einsum("bklc,ch->bklh", full_in, params["w1"]) + params["b1"], 0.0)
    pred = jnp.einsum("bklh,h->bkl", h, params["w2_col0"]) + params["b2"]
    tmask = observed_mask - cond_mask
    res = (noise - pred) * tmask
    denom = tmask.sum()
    return (res ** 2).sum() / jnp.where(denom > 0, denom, jnp.float32(1.0))


def base_diff_model_forward(key, is_train, observed_data, observed_masks,
                            observed_timestamps, observed_news, gt_masks, params,
                            use_pallas=True):
    k_mask, k_loss = jax.random.split(key)
    cond_mask = get_randmask(k_mask, observed_masks) if is_train else gt_masks
    time_embed = time_embedding(observed_timestamps, TIME_EMB)                 # (B, L, TIME_EMB)
    # side_info is never materialized as a (B, SIDE_DIM, K, L) tensor: time/feature blocks are
    # pre-contracted with their W1 rows; news + cond_mask ride in the packed data input.
    # TODO(synk): the real `src.model.DiffusionModel` is hydra-instantiated from an external
    # config; a deterministic pointwise-MLP surrogate with the same interface is used.
    # TODO(synk): is_train=False should run calc_loss_valid (average over all t) + impute();
    # that needs the external model's full reverse-diffusion sampler, so only the single-t
    # training loss is computed here (set_t=0 when not training).
    loss_fn = calc_loss_pallas if use_pallas else calc_loss_reference
    loss = loss_fn(k_loss, observed_data, cond_mask, observed_masks, observed_news,
                   time_embed, params, is_train=is_train, set_t=0)
    return {"loss": loss}


# ======================================= main =========================================
if __name__ == "__main__":
    key = jax.random.PRNGKey(0)
    (k_data, k_obs_mask, k_gt_mask, k_news,
     k_emb, k_w1, k_b1, k_w2, k_b2, k_fwd) = jax.random.split(key, 10)

    observed_data = jax.random.normal(k_data, (B, K, L), dtype=jnp.float32)
    observed_masks = (jax.random.uniform(k_obs_mask, (B, K, L)) < 0.8).astype(jnp.float32)
    gt_masks = observed_masks * (jax.random.uniform(k_gt_mask, (B, K, L)) < 0.5).astype(jnp.float32)
    observed_timestamps = jnp.broadcast_to(jnp.arange(L, dtype=jnp.float32)[None, :], (B, L))
    observed_news = jax.random.normal(k_news, (B, K, L, NEWS_EMB), dtype=jnp.float32)

    # Surrogate DiffusionModel parameters: pointwise 2-layer MLP over the CIN input channels
    # (channel order: [cond_obs, noisy_target, side(SIDE_DIM), t/num_steps]); only the used
    # output column of W2 is kept.
    params = {
        "feature_embed": 0.1 * jax.random.normal(k_emb, (K, FEAT_EMB), dtype=jnp.float32),
        "w1": 0.1 * jax.random.normal(k_w1, (CIN, HIDDEN), dtype=jnp.float32),
        "b1": 0.05 * jax.random.normal(k_b1, (HIDDEN,), dtype=jnp.float32),
        "w2_col0": 0.1 * jax.random.normal(k_w2, (HIDDEN,), dtype=jnp.float32),
        "b2": 0.05 * jax.random.normal(k_b2, (), dtype=jnp.float32),
    }

    fwd = jax.jit(base_diff_model_forward, static_argnums=(1,),
                  static_argnames=("use_pallas",))

    out = fwd(k_fwd, True, observed_data, observed_masks,
              observed_timestamps, observed_news, gt_masks, params, use_pallas=True)
    loss = jax.block_until_ready(out["loss"])

    ref = fwd(k_fwd, True, observed_data, observed_masks,
              observed_timestamps, observed_news, gt_masks, params, use_pallas=False)
    loss_ref = jax.block_until_ready(ref["loss"])

    assert jnp.isfinite(loss), loss
    assert jnp.allclose(loss, loss_ref, rtol=1e-3, atol=1e-4), (loss, loss_ref)
    print("KERNEL_OK")
</pallas_src>

<mosaic_0001>
module attributes {stable_mosaic.version = 11 : i64} {
  func.func @_fused_loss_kernel(%arg0: memref<2x4xf32, #tpu.memory_space<smem>>, %arg1: memref<2x32x8xf32, #tpu.memory_space<vmem>>, %arg2: memref<2x8x32xf32, #tpu.memory_space<vmem>>, %arg3: memref<4x32xf32, #tpu.memory_space<vmem>>, %arg4: memref<16x32xf32, #tpu.memory_space<vmem>>, %arg5: memref<1x1xf32, #tpu.memory_space<vmem>>) attributes {dimension_semantics = [], scalar_prefetch = 0 : i64, scratch_operands = 0 : i64, tpu.core_type = #tpu.core_type<tc>} {
    %c0 = arith.constant 0 : index
    %c0_0 = arith.constant 0 : index
    %0 = vector.load %arg4[%c0, %c0_0] : memref<16x32xf32, #tpu.memory_space<vmem>>, vector<8x32xf32>
    %c8 = arith.constant 8 : index
    %c0_1 = arith.constant 0 : index
    %1 = vector.load %arg4[%c8, %c0_1] : memref<16x32xf32, #tpu.memory_space<vmem>>, vector<1x32xf32>
    %c0_2 = arith.constant 0 : index
    %c2 = arith.constant 2 : index
    %2 = memref.load %arg0[%c0_2, %c2] : memref<2x4xf32, #tpu.memory_space<smem>>
    %c0_3 = arith.constant 0 : index
    %c0_4 = arith.constant 0 : index
    %3 = vector.load %arg3[%c0_3, %c0_4] : memref<4x32xf32, #tpu.memory_space<vmem>>, vector<1x32xf32>
    %4 = vector.shape_cast %3 : vector<1x32xf32> to vector<1x32xf32>
    %5 = vector.broadcast %4 : vector<1x32xf32> to vector<8x32xf32>
    %c1 = arith.constant 1 : index
    %c0_5 = arith.constant 0 : index
    %6 = vector.load %arg3[%c1, %c0_5] : memref<4x32xf32, #tpu.memory_space<vmem>>, vector<1x32xf32>
    %7 = vector.shape_cast %6 : vector<1x32xf32> to vector<1x32xf32>
    %8 = vector.broadcast %7 : vector<1x32xf32> to vector<8x32xf32>
    %c2_6 = arith.constant 2 : index
    %c0_7 = arith.constant 0 : index
    %9 = vector.load %arg3[%c2_6, %c0_7] : memref<4x32xf32, #tpu.memory_space<vmem>>, vector<1x32xf32>
    %10 = vector.shape_cast %9 : vector<1x32xf32> to vector<1x32xf32>
    %11 = vector.broadcast %10 : vector<1x32xf32> to vector<8x32xf32>
    %c3 = arith.constant 3 : index
    %c0_8 = arith.constant 0 : index
    %12 = vector.load %arg3[%c3, %c0_8] : memref<4x32xf32, #tpu.memory_space<vmem>>, vector<1x32xf32>
    %13 = vector.shape_cast %12 : vector<1x32xf32> to vector<1x32xf32>
    %14 = vector.broadcast %13 : vector<1x32xf32> to vector<8x32xf32>
    %15 = tpu.concatenate %5, %8, %11, %14 in 0 : vector<8x32xf32>, vector<8x32xf32>, vector<8x32xf32>, vector<8x32xf32> -> vector<32x32xf32>
    %16 = tpu.iota {dimensions = array<i32: 1>} : vector<32x8xi32>
    %c0_9 = arith.constant 0 : index
    %c0_10 = arith.constant 0 : index
    %17 = memref.load %arg0[%c0_9, %c0_10] : memref<2x4xf32, #tpu.memory_space<smem>>
    %c0_11 = arith.constant 0 : index
    %c1_12 = arith.constant 1 : index
    %18 = memref.load %arg0[%c0_11, %c1_12] : memref<2x4xf32, #tpu.memory_space<smem>>
    %c0_13 = arith.constant 0 : index
    %c0_14 = arith.constant 0 : index
    %c0_15 = arith.constant 0 : index
    %19 = vector.load %arg1[%c0_13, %c0_14, %c0_15] : memref<2x32x8xf32, #tpu.memory_space<vmem>>, vector<1x32x8xf32>
    %20 = vector.shape_cast %19 : vector<1x32x8xf32> to vector<32x8xf32>
    %21 = vector.extract_strided_slice %20 {offsets = [0, 0], sizes = [32, 1], strides = [1, 1]} : vector<32x8xf32> to vector<32x1xf32>
    %22 = vector.extract_strided_slice %20 {offsets = [0, 1], sizes = [32, 1], strides = [1, 1]} : vector<32x8xf32> to vector<32x1xf32>
    %23 = vector.extract_strided_slice %20 {offsets = [0, 2], sizes = [32, 1], strides = [1, 1]} : vector<32x8xf32> to vector<32x1xf32>
    %24 = vector.extract_strided_slice %20 {offsets = [0, 3], sizes = [32, 1], strides = [1, 1]} : vector<32x8xf32> to vector<32x1xf32>
    %25 = arith.mulf %23, %21 : vector<32x1xf32>
    %cst = arith.constant 1.000000e+00 : f32
    %26 = vector.broadcast %cst : f32 to vector<32x1xf32>
    %27 = arith.subf %26, %23 : vector<32x1xf32>
    %28 = vector.broadcast %17 : f32 to vector<32x1xf32>
    %29 = arith.mulf %28, %21 : vector<32x1xf32>
    %30 = vector.broadcast %18 : f32 to vector<32x1xf32>
    %31 = arith.mulf %30, %22 : vector<32x1xf32>
    %32 = arith.addf %29, %31 : vector<32x1xf32>
    %33 = arith.mulf %27, %32 : vector<32x1xf32>
    %c0_i32 = arith.constant 0 : i32
    %34 = vector.broadcast %c0_i32 : i32 to vector<32x8xi32>
    %35 = arith.cmpi eq, %16, %34 : vector<32x8xi32>
    %c1_i32 = arith.constant 1 : i32
    %36 = vector.broadcast %c1_i32 : i32 to vector<32x8xi32>
    %37 = arith.cmpi eq, %16, %36 : vector<32x8xi32>
    %38 = vector.shape_cast %33 : vector<32x1xf32> to vector<32x1xf32>
    %39 = vector.broadcast %38 : vector<32x1xf32> to vector<32x8xf32>
    %40 = arith.select %37, %39, %20 : vector<32x8xi1>, vector<32x8xf32>
    %41 = vector.shape_cast %25 : vector<32x1xf32> to vector<32x1xf32>
    %42 = vector.broadcast %41 : vector<32x1xf32> to vector<32x8xf32>
    %43 = arith.select %35, %42, %40 : vector<32x8xi1>, vector<32x8xf32>
    %cst_16 = arith.constant dense<0.000000e+00> : vector<32x32xf32>
    %44 = tpu.matmul %43, %0, %cst_16 {dimension_numbers = #tpu.dot_dimension_numbers<[1], [0], [0], [1], [0, 0, 1, 1], [], []>} : vector<32x8xf32>, vector<8x32xf32>, vector<32x32xf32> -> vector<32x32xf32>
    %c0_17 = arith.constant 0 : index
    %c0_18 = arith.constant 0 : index
    %c0_19 = arith.constant 0 : index
    %45 = vector.load %arg2[%c0_17, %c0_18, %c0_19] : memref<2x8x32xf32, #tpu.memory_space<vmem>>, vector<1x8x32xf32>
    %46 = vector.shape_cast %45 : vector<1x8x32xf32> to vector<8x32xf32>
    %47 = tpu.concatenate %46, %46, %46, %46 in 0 : vector<8x32xf32>, vector<8x32xf32>, vector<8x32xf32>, vector<8x32xf32> -> vector<32x32xf32>
    %48 = arith.addf %47, %15 : vector<32x32xf32>
    %49 = arith.addf %44, %48 : vector<32x32xf32>
    %cst_20 = arith.constant 0.000000e+00 : f32
    %50 = vector.broadcast %cst_20 : f32 to vector<32x32xf32>
    %51 = arith.maximumf %49, %50 : vector<32x32xf32>
    %52 = vector.broadcast %1 : vector<1x32xf32> to vector<32x32xf32>
    %53 = arith.mulf %51, %52 : vector<32x32xf32>
    %cst_21 = arith.constant dense<0.000000e+00> : vector<32xf32>
    %54 = vector.multi_reduction <add>, %53, %cst_21 [1] : vector<32x32xf32> to vector<32xf32>
    %55 = vector.shape_cast %54 : vector<32xf32> to vector<32x1xf32>
    %56 = vector.broadcast %2 : f32 to vector<32x1xf32>
    %57 = arith.addf %55, %56 : vector<32x1xf32>
    %58 = arith.subf %24, %23 : vector<32x1xf32>
    %59 = arith.subf %22, %57 : vector<32x1xf32>
    %60 = arith.mulf %59, %58 : vector<32x1xf32>
    %61 = arith.mulf %60, %60 : vector<32x1xf32>
    %62 = vector.shape_cast %61 : vector<32x1xf32> to vector<1x32x1xf32>
    %cst_22 = arith.constant dense<0.000000e+00> : vector<1xf32>
    %63 = vector.multi_reduction <add>, %62, %cst_22 [1, 2] : vector<1x32x1xf32> to vector<1xf32>
    %64 = vector.shape_cast %63 : vector<1xf32> to vector<1x1x1xf32>
    %65 = vector.extract %64[0, 0, 0] : f32 from vector<1x1x1xf32>
    %cst_23 = arith.constant 0.000000e+00 : f32
    %66 = arith.addf %cst_23, %65 : f32
    %67 = vector.shape_cast %58 : vector<32x1xf32> to vector<1x32x1xf32>
    %cst_24 = arith.constant dense<0.000000e+00> : vector<1xf32>
    %68 = vector.multi_reduction <add>, %67, %cst_24 [1, 2] : vector<1x32x1xf32> to vector<1xf32>
    %69 = vector.shape_cast %68 : vector<1xf32> to vector<1x1x1xf32>
    %70 = vector.extract %69[0, 0, 0] : f32 from vector<1x1x1xf32>
    %cst_25 = arith.constant 0.000000e+00 : f32
    %71 = arith.addf %cst_25, %70 : f32
    %c1_26 = arith.constant 1 : index
    %c0_27 = arith.constant 0 : index
    %72 = memref.load %arg0[%c1_26, %c0_27] : memref<2x4xf32, #tpu.memory_space<smem>>
    %c1_28 = arith.constant 1 : index
    %c1_29 = arith.constant 1 : index
    %73 = memref.load %arg0[%c1_28, %c1_29] : memref<2x4xf32, #tpu.memory_space<smem>>
    %c1_30 = arith.constant 1 : index
    %c0_31 = arith.constant 0 : index
    %c0_32 = arith.constant 0 : index
    %74 = vector.load %arg1[%c1_30, %c0_31, %c0_32] : memref<2x32x8xf32, #tpu.memory_space<vmem>>, vector<1x32x8xf32>
    %75 = vector.shape_cast %74 : vector<1x32x8xf32> to vector<32x8xf32>
    %76 = vector.extract_strided_slice %75 {offsets = [0, 0], sizes = [32, 1], strides = [1, 1]} : vector<32x8xf32> to vector<32x1xf32>
    %77 = vector.extract_strided_slice %75 {offsets = [0, 1], sizes = [32, 1], strides = [1, 1]} : vector<32x8xf32> to vector<32x1xf32>
    %78 = vector.extract_strided_slice %75 {offsets = [0, 2], sizes = [32, 1], strides = [1, 1]} : vector<32x8xf32> to vector<32x1xf32>
    %79 = vector.extract_strided_slice %75 {offsets = [0, 3], sizes = [32, 1], strides = [1, 1]} : vector<32x8xf32> to vector<32x1xf32>
    %80 = arith.mulf %78, %76 : vector<32x1xf32>
    %cst_33 = arith.constant 1.000000e+00 : f32
    %81 = vector.broadcast %cst_33 : f32 to vector<32x1xf32>
    %82 = arith.subf %81, %78 : vector<32x1xf32>
    %83 = vector.broadcast %72 : f32 to vector<32x1xf32>
    %84 = arith.mulf %83, %76 : vector<32x1xf32>
    %85 = vector.broadcast %73 : f32 to vector<32x1xf32>
    %86 = arith.mulf %85, %77 : vector<32x1xf32>
    %87 = arith.addf %84, %86 : vector<32x1xf32>
    %88 = arith.mulf %82, %87 : vector<32x1xf32>
    %c0_i32_34 = arith.constant 0 : i32
    %89 = vector.broadcast %c0_i32_34 : i32 to vector<32x8xi32>
    %90 = arith.cmpi eq, %16, %89 : vector<32x8xi32>
    %c1_i32_35 = arith.constant 1 : i32
    %91 = vector.broadcast %c1_i32_35 : i32 to vector<32x8xi32>
    %92 = arith.cmpi eq, %16, %91 : vector<32x8xi32>
    %93 = vector.shape_cast %88 : vector<32x1xf32> to vector<32x1xf32>
    %94 = vector.broadcast %93 : vector<32x1xf32> to vector<32x8xf32>
    %95 = arith.select %92, %94, %75 : vector<32x8xi1>, vector<32x8xf32>
    %96 = vector.shape_cast %80 : vector<32x1xf32> to vector<32x1xf32>
    %97 = vector.broadcast %96 : vector<32x1xf32> to vector<32x8xf32>
    %98 = arith.select %90, %97, %95 : vector<32x8xi1>, vector<32x8xf32>
    %cst_36 = arith.constant dense<0.000000e+00> : vector<32x32xf32>
    %99 = tpu.matmul %98, %0, %cst_36 {dimension_numbers = #tpu.dot_dimension_numbers<[1], [0], [0], [1], [0, 0, 1, 1], [], []>} : vector<32x8xf32>, vector<8x32xf32>, vector<32x32xf32> -> vector<32x32xf32>
    %c1_37 = arith.constant 1 : index
    %c0_38 = arith.constant 0 : index
    %c0_39 = arith.constant 0 : index
    %100 = vector.load %arg2[%c1_37, %c0_38, %c0_39] : memref<2x8x32xf32, #tpu.memory_space<vmem>>, vector<1x8x32xf32>
    %101 = vector.shape_cast %100 : vector<1x8x32xf32> to vector<8x32xf32>
    %102 = tpu.concatenate %101, %101, %101, %101 in 0 : vector<8x32xf32>, vector<8x32xf32>, vector<8x32xf32>, vector<8x32xf32> -> vector<32x32xf32>
    %103 = arith.addf %102, %15 : vector<32x32xf32>
    %104 = arith.addf %99, %103 : vector<32x32xf32>
    %cst_40 = arith.constant 0.000000e+00 : f32
    %105 = vector.broadcast %cst_40 : f32 to vector<32x32xf32>
    %106 = arith.maximumf %104, %105 : vector<32x32xf32>
    %107 = vector.broadcast %1 : vector<1x32xf32> to vector<32x32xf32>
    %108 = arith.mulf %106, %107 : vector<32x32xf32>
    %cst_41 = arith.constant dense<0.000000e+00> : vector<32xf32>
    %109 = vector.multi_reduction <add>, %108, %cst_41 [1] : vector<32x32xf32> to vector<32xf32>
    %110 = vector.shape_cast %109 : vector<32xf32> to vector<32x1xf32>
    %111 = vector.broadcast %2 : f32 to vector<32x1xf32>
    %112 = arith.addf %110, %111 : vector<32x1xf32>
    %113 = arith.subf %79, %78 : vector<32x1xf32>
    %114 = arith.subf %77, %112 : vector<32x1xf32>
    %115 = arith.mulf %114, %113 : vector<32x1xf32>
    %116 = arith.mulf %115, %115 : vector<32x1xf32>
    %117 = vector.shape_cast %116 : vector<32x1xf32> to vector<1x32x1xf32>
    %cst_42 = arith.constant dense<0.000000e+00> : vector<1xf32>
    %118 = vector.multi_reduction <add>, %117, %cst_42 [1, 2] : vector<1x32x1xf32> to vector<1xf32>
    %119 = vector.shape_cast %118 : vector<1xf32> to vector<1x1x1xf32>
    %120 = vector.extract %119[0, 0, 0] : f32 from vector<1x1x1xf32>
    %121 = arith.addf %66, %120 : f32
    %122 = vector.shape_cast %113 : vector<32x1xf32> to vector<1x32x1xf32>
    %cst_43 = arith.constant dense<0.000000e+00> : vector<1xf32>
    %123 = vector.multi_reduction <add>, %122, %cst_43 [1, 2] : vector<1x32x1xf32> to vector<1xf32>
    %124 = vector.shape_cast %123 : vector<1xf32> to vector<1x1x1xf32>
    %125 = vector.extract %124[0, 0, 0] : f32 from vector<1x1x1xf32>
    %126 = arith.addf %71, %125 : f32
    %cst_44 = arith.constant 0.000000e+00 : f32
    %127 = arith.cmpf ogt, %126, %cst_44 : f32
    %cst_45 = arith.constant 1.000000e+00 : f32
    %128 = arith.select %127, %126, %cst_45 : f32
    %129 = arith.divf %121, %128 : f32
    %130 = vector.broadcast %129 : f32 to vector<1x1xf32>
    %c0_46 = arith.constant 0 : index
    %c0_47 = arith.constant 0 : index
    %131 = vector.load %arg5[%c0_46, %c0_47] : memref<1x1xf32, #tpu.memory_space<vmem>>, vector<1x1xf32>
    tpu.vector_store %arg5[%c0_46, %c0_47], %130 {strides = array<i32>} : memref<1x1xf32, #tpu.memory_space<vmem>>, vector<1x1xf32>,
    return
  }
}

</mosaic_0001>

<llo_original>
// kernel: base_diff_model_forward.37
$region0: #{base_diff_model_forward.37}
  #allocation0 [shape = 'u32[]', space=smem, size = 0x4, offset = 0x4, fixed_abs, tag = 'smem constant byte address 0x4 - core index']
  #allocation1 [shape = 'u32[144,128]{1,0:T(1,128)}', space=vmem, size = 0x12000, scoped, tag = 'internal scratch']
  %s0 = inlined_call_operand.vmem [shape: f32[2,4], index: 0, kind: input, shape index: {}]
  %s1 = inlined_call_operand.vmem [shape: f32[2,32,8], index: 1, kind: input, shape index: {}]
  %s2 = inlined_call_operand.vmem [shape: f32[2,8,32], index: 2, kind: input, shape index: {}]
  %s3 = inlined_call_operand.vmem [shape: f32[4,32], index: 3, kind: input, shape index: {}]
  %s4 = inlined_call_operand.vmem [shape: f32[16,32], index: 4, kind: input, shape index: {}]
  %s5 = inlined_call_operand.hbm [shape: f32[1,1], index: 5, kind: output, shape index: {}]
  %s6 = sld [smem:[#allocation0]]
  $region34: #{base_diff_model_forward.37} parent=0
    _
  %s8 = ssub.s32 1, %s6
  %s9 = scalar_select 0, %s8, %s6
  $region1: #{base_diff_model_forward.37} parent=0
    #allocation2 [shape = 'u8[1024]{0}', space=smem, size = 0x400, scoped, tag = 'input window, operand 0, single buffered']
    #allocation3 [shape = 's32[1]{0}', space=sflag, size = 0x4, scoped, tag = 'scoped memory for base_diff_model_forward.37']
    #allocation4 [shape = 's32[1]{0}', space=sflag, size = 0x4, scoped, tag = 'scoped memory for base_diff_model_forward.37']
    #allocation5 [shape = 'u8[512]{0}', space=vmem, size = 0x400, scoped, tag = 'output window, operand 0, single buffered']
    %10 = vsyncpa [#allocation4], 0
    %11 = vsyncpa [#allocation3], 0
    // Predicated region
    $region2: #{base_diff_model_forward.37} parent=1 // pred_check
      _
    $region3: #{base_diff_model_forward.37} parent=1 // pred_check_branch
      %13 = sbr.rel (0) target = $region5
    $region4: #{base_diff_model_forward.37} parent=1 // pred_region
      %s15 = ssub.s32 32, 32
      %16 = vsyncadd [#allocation4], %s15
      %s18 = sshll.u32 %s0, 4
      %s19 = int_to_ptr.vmem [resolvable:$true] %s18
      %21 = dma.vmem_to_smem %s19, 32, [#allocation2], [#allocation4]
    $region5: #{base_diff_model_forward.37} parent=1 // pred_fallthru
      _
    // Predicated region
    $region6: #{base_diff_model_forward.37} parent=1 // pred_check
      _
    $region7: #{base_diff_model_forward.37} parent=1 // pred_check_branch
      %23 = sbr.rel (0) target = $region9
    $region8: #{base_diff_model_forward.37} parent=1 // pred_region
      _
    $region9: #{base_diff_model_forward.37} parent=1 // pred_fallthru
      _
    // Predicated region
    $region10: #{base_diff_model_forward.37} parent=1 // pred_check
      _
    $region11: #{base_diff_model_forward.37} parent=1 // pred_check_branch
      %25 = sbr.rel (0) target = $region13
    $region12: #{base_diff_model_forward.37} parent=1 // pred_region
      _
    $region13: #{base_diff_model_forward.37} parent=1 // pred_fallthru
      _
    // Predicated region
    $region14: #{base_diff_model_forward.37} parent=1 // pred_check
      _
    $region15: #{base_diff_model_forward.37} parent=1 // pred_check_branch
      %27 = sbr.rel (0) target = $region17
    $region16: #{base_diff_model_forward.37} parent=1 // pred_region
      _
    $region17: #{base_diff_model_forward.37} parent=1 // pred_fallthru
      _
    // Predicated region
    $region18: #{base_diff_model_forward.37} parent=1 // pred_check
      _
    $region19: #{base_diff_model_forward.37} parent=1 // pred_check_branch
      %29 = sbr.rel (0) target = $region21
    $region20: #{base_diff_model_forward.37} parent=1 // pred_region
      _
    $region21: #{base_diff_model_forward.37} parent=1 // pred_fallthru
      _
    // Predicated region
    $region22: #{base_diff_model_forward.37} parent=1 // pred_check
      _
    $region23: #{base_diff_model_forward.37} parent=1 // pred_check_branch
      %31 = sbr.rel (0) target = $region25
    $region24: #{base_diff_model_forward.37} parent=1 // pred_region
      %32 = dma.done [#allocation4], 32
    $region25: #{base_diff_model_forward.37} parent=1 // pred_fallthru
      _
    %33 = sfence
    %v34 = vld [vmem:[%s4] sm:$0xff]
    %v35 = vld [vmem:[%s4 + $0x8] sm:$0x1]
    %s36 = sld [smem:[#allocation2 + $0x2]]
    %v37 = vld [vmem:[%s3] sm:$0x1]
    %v38 = vlaneseq
    %v39 = vshrl.u32 %v38, 7
    %v40 = vsub.s32 0, %v39
    %v41 = vrot.slane %v37, %v40
    %v42 = vld [vmem:[%s3 + $0x1] sm:$0x1]
    %v43 = vlaneseq
    %v44 = vshrl.u32 %v43, 7
    %v45 = vsub.s32 0, %v44
    %v46 = vrot.slane %v42, %v45
    %v47 = vld [vmem:[%s3 + $0x2] sm:$0x1]
    %v48 = vlaneseq
    %v49 = vshrl.u32 %v48, 7
    %v50 = vsub.s32 0, %v49
    %v51 = vrot.slane %v47, %v50
    %v52 = vld [vmem:[%s3 + $0x3] sm:$0x1]
    %v53 = vlaneseq
    %v54 = vshrl.u32 %v53, 7
    %v55 = vsub.s32 0, %v54
    %v56 = vrot.slane %v52, %v55
    %v57 = vlaneseq
    %v58 = vand.u32 %v57, 127
    %s59 = sld [smem:[#allocation2]]
    %s60 = sld [smem:[#allocation2 + $0x1]]
    %v61 = vld [vmem:[%s1] sm:$0xff]
    %v62 = vld [vmem:[%s1 + $0x8] sm:$0xff]
    %v63 = vld [vmem:[%s1 + $0x10] sm:$0xff]
    %v64 = vld [vmem:[%s1 + $0x18] sm:$0xff]
    %69 = vrot.lane.b32.xlu0 %v61, 2
    %v70 = vpop.permute.xlu0 %69
    %71 = vrot.lane.b32.xlu0 %v62, 2
    %v72 = vpop.permute.xlu0 %71
    %73 = vrot.lane.b32.xlu0 %v63, 2
    %v74 = vpop.permute.xlu0 %73
    %75 = vrot.lane.b32.xlu0 %v64, 2
    %v76 = vpop.permute.xlu0 %75
    %v81 = vmul.f32 %v61, %v70
    %v82 = vmul.f32 %v62, %v72
    %v83 = vmul.f32 %v63, %v74
    %v84 = vmul.f32 %v64, %v76
    %v85 = vsub.f32 1.0, %v61
    %v86 = vsub.f32 1.0, %v62
    %v87 = vsub.f32 1.0, %v63
    %v88 = vsub.f32 1.0, %v64
    %v89 = vstv %s59
    %v90 = vmul.f32 %v89, %v61
    %v91 = vmul.f32 %v89, %v62
    %v92 = vmul.f32 %v89, %v63
    %v93 = vmul.f32 %v89, %v64
    %v94 = vstv %s60
    %v95 = vmul.f32 %v94, %v61
    %v96 = vmul.f32 %v94, %v62
    %v97 = vmul.f32 %v94, %v63
    %v98 = vmul.f32 %v94, %v64
    %103 = vrot.lane.b32.xlu0 %v95, 127
    %v104 = vpop.permute.xlu0 %103
    %105 = vrot.lane.b32.xlu0 %v96, 127
    %v106 = vpop.permute.xlu0 %105
    %107 = vrot.lane.b32.xlu0 %v97, 127
    %v108 = vpop.permute.xlu0 %107
    %109 = vrot.lane.b32.xlu0 %v98, 127
    %v110 = vpop.permute.xlu0 %109
    %v115 = vadd.f32 %v90, %v104
    %v116 = vadd.f32 %v91, %v106
    %v117 = vadd.f32 %v92, %v108
    %v118 = vadd.f32 %v93, %v110
    %123 = vrot.lane.b32.xlu0 %v115, 2
    %v124 = vpop.permute.xlu0 %123
    %125 = vrot.lane.b32.xlu0 %v116, 2
    %v126 = vpop.permute.xlu0 %125
    %127 = vrot.lane.b32.xlu0 %v117, 2
    %v128 = vpop.permute.xlu0 %127
    %129 = vrot.lane.b32.xlu0 %v118, 2
    %v130 = vpop.permute.xlu0 %129
    %v135 = vmul.f32 %v85, %v124
    %v136 = vmul.f32 %v86, %v126
    %v137 = vmul.f32 %v87, %v128
    %v138 = vmul.f32 %v88, %v130
    %vm139 = vcmp.eq.s32.totalorder %v58, 0
    %vm140 = vcmp.eq.s32.totalorder %v58, 1
    %142 = vset.pattern.permute.xlu0 2
    %143 = vperm.xlu0 %142, %v135
    %v144 = vpop.permute.xlu0 %143
    %147 = vset.pattern.permute.xlu0 2
    %148 = vperm.xlu0 %147, %v136
    %v149 = vpop.permute.xlu0 %148
    %152 = vset.pattern.permute.xlu0 2
    %153 = vperm.xlu0 %152, %v137
    %v154 = vpop.permute.xlu0 %153
    %157 = vset.pattern.permute.xlu0 2
    %158 = vperm.xlu0 %157, %v138
    %v159 = vpop.permute.xlu0 %158
    %v161 = vsel %vm140, %v144, %v61
    %v162 = vsel %vm140, %v149, %v62
    %v163 = vsel %vm140, %v154, %v63
    %v164 = vsel %vm140, %v159, %v64
    %166 = vset.pattern.permute.xlu0 2
    %167 = vperm.xlu0 %166, %v81
    %v168 = vpop.permute.xlu0 %167
    %171 = vset.pattern.permute.xlu0 2
    %172 = vperm.xlu0 %171, %v82
    %v173 = vpop.permute.xlu0 %172
    %176 = vset.pattern.permute.xlu0 2
    %177 = vperm.xlu0 %176, %v83
    %v178 = vpop.permute.xlu0 %177
    %181 = vset.pattern.permute.xlu0 2
    %182 = vperm.xlu0 %181, %v84
    %v183 = vpop.permute.xlu0 %182
    %v185 = vsel %vm139, %v168, %v161
    %v186 = vsel %vm139, %v173, %v162
    %v187 = vsel %vm139, %v178, %v163
    %v188 = vsel %vm139, %v183, %v164
    %v189 = vld [vmem:[%s2] sm:$0xff]
    %v190 = vadd.f32 %v189, %v41
    %v191 = vadd.f32 %v189, %v46
    %v192 = vadd.f32 %v189, %v51
    %v193 = vadd.f32 %v189, %v56
    %vm194 = vcmask 64512
    %v196 = vsel %vm194, %v185, 0
    %v199 = vsel %vm194, %v186, 0
    %v202 = vsel %vm194, %v187, 0
    %v205 = vsel %vm194, %v188, 0
    %207 = vmatprep.subr.mxu0 0.0
    %208 = vmatpush1.msra.mxu0 0.0
    %209 = vmatprep.subr.mxu0 0.0
    %210 = vmatpush1.msra.mxu0 0.0
    %211 = vmatprep.subr.mxu0 0.0
    %212 = vmatpush1.msra.mxu0 0.0
    %213 = vmatprep.subr.mxu0 0.0
    %214 = vmatpush1.msra.mxu0 0.0
    %215 = vmatprep.subr.mxu0 0.0
    %216 = vmatpush1.msra.mxu0 0.0
    %217 = vmatprep.subr.mxu0 0.0
    %218 = vmatpush1.msra.mxu0 0.0
    %219 = vmatprep.subr.mxu0 0.0
    %220 = vmatpush1.msra.mxu0 0.0
    %221 = vmatprep.subr.mxu0 0.0
    %222 = vmatpush1.msra.mxu0 0.0
    %223 = vmatprep.subr.mxu0 0.0
    %224 = vmatpush1.msra.mxu0 0.0
    %225 = vmatprep.subr.mxu0 0.0
    %226 = vmatpush1.msra.mxu0 0.0
    %227 = vmatprep.subr.mxu0 0.0
    %228 = vmatpush1.msra.mxu0 0.0
    %229 = vmatprep.subr.mxu0 0.0
    %230 = vmatpush1.msra.mxu0 0.0
    %231 = vmatprep.subr.mxu0 0.0
    %232 = vmatpush1.msra.mxu0 0.0
    %233 = vmatprep.subr.mxu0 0.0
    %234 = vmatpush1.msra.mxu0 0.0
    %235 = vmatprep.subr.mxu0 0.0
    %236 = vmatpush1.msra.mxu0 0.0
    %237 = vmatprep.subr.mxu0 0.0
    %238 = vmatpush1.msra.mxu0 %v34
    %239 = vmatprep.subr.mxu0 0.0
    %240 = vmatpush2.msra.mxu0 0.0
    %241 = vmatprep.subr.mxu0 0.0
    %242 = vmatpush2.msra.mxu0 0.0
    %243 = vmatprep.subr.mxu0 0.0
    %244 = vmatpush2.msra.mxu0 0.0
    %245 = vmatprep.subr.mxu0 0.0
    %246 = vmatpush2.msra.mxu0 0.0
    %247 = vmatprep.subr.mxu0 0.0
    %248 = vmatpush2.msra.mxu0 0.0
    %249 = vmatprep.subr.mxu0 0.0
    %250 = vmatpush2.msra.mxu0 0.0
    %251 = vmatprep.subr.mxu0 0.0
    %252 = vmatpush2.msra.mxu0 0.0
    %253 = vmatprep.subr.mxu0 0.0
    %254 = vmatpush2.msra.mxu0 0.0
    %255 = vmatprep.subr.mxu0 0.0
    %256 = vmatpush2.msra.mxu0 0.0
    %257 = vmatprep.subr.mxu0 0.0
    %258 = vmatpush2.msra.mxu0 0.0
    %259 = vmatprep.subr.mxu0 0.0
    %260 = vmatpush2.msra.mxu0 0.0
    %261 = vmatprep.subr.mxu0 0.0
    %262 = vmatpush2.msra.mxu0 0.0
    %263 = vmatprep.subr.mxu0 0.0
    %264 = vmatpush2.msra.mxu0 0.0
    %265 = vmatprep.subr.mxu0 0.0
    %266 = vmatpush2.msra.mxu0 0.0
    %267 = vmatprep.subr.mxu0 0.0
    %268 = vmatpush2.msra.mxu0 0.0
    %269 = vmatprep.subr.mxu0 0.0
    %270 = vmatpush2.msra.mxu0 0.0
    %271 = vmatprep.mubr.f32.mxu0 0.0
    %272 = vmatmul.mubr.f32.gmra.mxu0 %v196
    %v273 = vpop.f32.mrf.mxu0
    %v274 = vadd.f32 %v190, %v273
    %v275 = vpop.f32.mrf.mxu0
    %276 = vmatprep.mubr.f32.mxu0 0.0
    %277 = vmatmul.mubr.f32.gmra.mxu0 %v199
    %v278 = vpop.f32.mrf.mxu0
    %v279 = vadd.f32 %v191, %v278
    %v280 = vpop.f32.mrf.mxu0
    %281 = vmatprep.mubr.f32.mxu0 0.0
    %282 = vmatmul.mubr.f32.gmra.mxu0 %v202
    %v283 = vpop.f32.mrf.mxu0
    %v284 = vadd.f32 %v192, %v283
    %v285 = vpop.f32.mrf.mxu0
    %286 = vmatprep.mubr.f32.mxu0 0.0
    %287 = vmatmul.mubr.f32.gmra.mxu0 %v205
    %v288 = vpop.f32.mrf.mxu0
    %v289 = vadd.f32 %v193, %v288
    %v290 = vpop.f32.mrf.mxu0
    %291 = vdwg.mxu0
    %v292 = vmax.f32 %v274, 0.0
    %v293 = vmax.f32 %v279, 0.0
    %v294 = vmax.f32 %v284, 0.0
    %v295 = vmax.f32 %v289, 0.0
    %v296 = vlaneseq
    %v297 = vshrl.u32 %v296, 7
    %v298 = vsub.s32 0, %v297
    %v299 = vrot.slane %v35, %v298
    %v300 = vmul.f32 %v292, %v299
    %v301 = vmul.f32 %v293, %v299
    %v302 = vmul.f32 %v294, %v299
    %v303 = vmul.f32 %v295, %v299
    %vm304 = vcmask 261120
    %v305 = vsel %vm304, %v300, 0.0
    %306 = vadd.xlane.f32.xlu0 %v305
    %v307 = vpop.xlane.xlu0 %306
    %v308 = vsel %vm304, %v301, 0.0
    %309 = vadd.xlane.f32.xlu0 %v308
    %v310 = vpop.xlane.xlu0 %309
    %v311 = vsel %vm304, %v302, 0.0
    %312 = vadd.xlane.f32.xlu0 %v311
    %v313 = vpop.xlane.xlu0 %312
    %v314 = vsel %vm304, %v303, 0.0
    %315 = vadd.xlane.f32.xlu0 %v314
    %v316 = vpop.xlane.xlu0 %315
    %v317 = vstv %s36
    %v318 = vadd.f32 %v307, %v317
    %v319 = vadd.f32 %v310, %v317
    %v320 = vadd.f32 %v313, %v317
    %v321 = vadd.f32 %v316, %v317
    %322 = vrot.lane.b32.xlu0 %v61, 1
    %v323 = vpop.permute.xlu0 %322
    %324 = vrot.lane.b32.xlu0 %v62, 1
    %v325 = vpop.permute.xlu0 %324
    %326 = vrot.lane.b32.xlu0 %v63, 1
    %v327 = vpop.permute.xlu0 %326
    %328 = vrot.lane.b32.xlu0 %v64, 1
    %v329 = vpop.permute.xlu0 %328
    %v334 = vsub.f32 %v61, %v323
    %v335 = vsub.f32 %v62, %v325
    %v336 = vsub.f32 %v63, %v327
    %v337 = vsub.f32 %v64, %v329
    %v338 = vsub.f32 %v61, %v318
    %v339 = vsub.f32 %v62, %v319
    %v340 = vsub.f32 %v63, %v320
    %v341 = vsub.f32 %v64, %v321
    %346 = vrot.lane.b32.xlu0 %v334, 126
    %v347 = vpop.permute.xlu0 %346
    %348 = vrot.lane.b32.xlu0 %v335, 126
    %v349 = vpop.permute.xlu0 %348
    %350 = vrot.lane.b32.xlu0 %v336, 126
    %v351 = vpop.permute.xlu0 %350
    %352 = vrot.lane.b32.xlu0 %v337, 126
    %v353 = vpop.permute.xlu0 %352
    %v358 = vmul.f32 %v338, %v347
    %v359 = vmul.f32 %v339, %v349
    %v360 = vmul.f32 %v340, %v351
    %v361 = vmul.f32 %v341, %v353
    %v362 = vmul.f32 %v358, %v358
    %v363 = vmul.f32 %v359, %v359
    %v364 = vmul.f32 %v360, %v360
    %v365 = vmul.f32 %v361, %v361
    %370 = vrot.lane.b32.xlu0 %v362, 127
    %v371 = vpop.permute.xlu0 %370
    %372 = vrot.lane.b32.xlu0 %v363, 127
    %v373 = vpop.permute.xlu0 %372
    %374 = vrot.lane.b32.xlu0 %v364, 127
    %v375 = vpop.permute.xlu0 %374
    %376 = vrot.lane.b32.xlu0 %v365, 127
    %v377 = vpop.permute.xlu0 %376
    %vm382 = vcmask 7168
    %v383 = vsel %vm382, %v371, 0.0
    %v384 = vsel %vm382, %v373, 0.0
    %v385 = vadd.f32 %v383, %v384
    %v386 = vsel %vm382, %v375, 0.0
    %v387 = vadd.f32 %v385, %v386
    %v388 = vsel %vm382, %v377, 0.0
    %v389 = vadd.f32 %v387, %v388
    %390 = vadd.xlane.f32.xlu0 %v389
    %v391 = vpop.xlane.xlu0 %390
    %v392 = vrot.slane %v391, 4
    %v393 = vadd.f32 %v391, %v392
    %v394 = vrot.slane %v393, 2
    %v395 = vadd.f32 %v393, %v394
    %v396 = vrot.slane %v395, 1
    %v397 = vadd.f32 %v395, %v396
    %s398 = vtos %v397
    %s399 = sadd.f32 %s398, 0.0
    %400 = vrot.lane.b32.xlu0 %v334, 125
    %v401 = vpop.permute.xlu0 %400
    %402 = vrot.lane.b32.xlu0 %v335, 125
    %v403 = vpop.permute.xlu0 %402
    %404 = vrot.lane.b32.xlu0 %v336, 125
    %v405 = vpop.permute.xlu0 %404
    %406 = vrot.lane.b32.xlu0 %v337, 125
    %v407 = vpop.permute.xlu0 %406
    %v412 = vsel %vm382, %v401, 0.0
    %v413 = vsel %vm382, %v403, 0.0
    %v414 = vadd.f32 %v412, %v413
    %v415 = vsel %vm382, %v405, 0.0
    %v416 = vadd.f32 %v414, %v415
    %v417 = vsel %vm382, %v407, 0.0
    %v418 = vadd.f32 %v416, %v417
    %419 = vadd.xlane.f32.xlu0 %v418
    %v420 = vpop.xlane.xlu0 %419
    %v421 = vrot.slane %v420, 4
    %v422 = vadd.f32 %v420, %v421
    %v423 = vrot.slane %v422, 2
    %v424 = vadd.f32 %v422, %v423
    %v425 = vrot.slane %v424, 1
    %v426 = vadd.f32 %v424, %v425
    %s427 = vtos %v426
    %s428 = sadd.f32 %s427, 0.0
    %s429 = sld [smem:[#allocation2 + $0x80]]
    %s430 = sld [smem:[#allocation2 + $0x81]]
    %s431 = scalar_lea.vmem %s1, 32
    %v432 = vld [vmem:[%s431] sm:$0xff]
    %v433 = vld [vmem:[%s431 + $0x8] sm:$0xff]
    %v434 = vld [vmem:[%s431 + $0x10] sm:$0xff]
    %v435 = vld [vmem:[%s431 + $0x18] sm:$0xff]
    %440 = vrot.lane.b32.xlu0 %v432, 2
    %v441 = vpop.permute.xlu0 %440
    %442 = vrot.lane.b32.xlu0 %v433, 2
    %v443 = vpop.permute.xlu0 %442
    %444 = vrot.lane.b32.xlu0 %v434, 2
    %v445 = vpop.permute.xlu0 %444
    %446 = vrot.lane.b32.xlu0 %v435, 2
    %v447 = vpop.permute.xlu0 %446
    %v452 = vmul.f32 %v432, %v441
    %v453 = vmul.f32 %v433, %v443
    %v454 = vmul.f32 %v434, %v445
    %v455 = vmul.f32 %v435, %v447
    %v456 = vsub.f32 1.0, %v432
    %v457 = vsub.f32 1.0, %v433
    %v458 = vsub.f32 1.0, %v434
    %v459 = vsub.f32 1.0, %v435
    %v460 = vstv %s429
    %v461 = vmul.f32 %v460, %v432
    %v462 = vmul.f32 %v460, %v433
    %v463 = vmul.f32 %v460, %v434
    %v464 = vmul.f32 %v460, %v435
    %v465 = vstv %s430
    %v466 = vmul.f32 %v465, %v432
    %v467 = vmul.f32 %v465, %v433
    %v468 = vmul.f32 %v465, %v434
    %v469 = vmul.f32 %v465, %v435
    %474 = vrot.lane.b32.xlu0 %v466, 127
    %v475 = vpop.permute.xlu0 %474
    %476 = vrot.lane.b32.xlu0 %v467, 127
    %v477 = vpop.permute.xlu0 %476
    %478 = vrot.lane.b32.xlu0 %v468, 127
    %v479 = vpop.permute.xlu0 %478
    %480 = vrot.lane.b32.xlu0 %v469, 127
    %v481 = vpop.permute.xlu0 %480
    %v486 = vadd.f32 %v461, %v475
    %v487 = vadd.f32 %v462, %v477
    %v488 = vadd.f32 %v463, %v479
    %v489 = vadd.f32 %v464, %v481
    %494 = vrot.lane.b32.xlu0 %v486, 2
    %v495 = vpop.permute.xlu0 %494
    %496 = vrot.lane.b32.xlu0 %v487, 2
    %v497 = vpop.permute.xlu0 %496
    %498 = vrot.lane.b32.xlu0 %v488, 2
    %v499 = vpop.permute.xlu0 %498
    %500 = vrot.lane.b32.xlu0 %v489, 2
    %v501 = vpop.permute.xlu0 %500
    %v506 = vmul.f32 %v456, %v495
    %v507 = vmul.f32 %v457, %v497
    %v508 = vmul.f32 %v458, %v499
    %v509 = vmul.f32 %v459, %v501
    %511 = vset.pattern.permute.xlu0 2
    %512 = vperm.xlu0 %511, %v506
    %v513 = vpop.permute.xlu0 %512
    %516 = vset.pattern.permute.xlu0 2
    %517 = vperm.xlu0 %516, %v507
    %v518 = vpop.permute.xlu0 %517
    %521 = vset.pattern.permute.xlu0 2
    %522 = vperm.xlu0 %521, %v508
    %v523 = vpop.permute.xlu0 %522
    %526 = vset.pattern.permute.xlu0 2
    %527 = vperm.xlu0 %526, %v509
    %v528 = vpop.permute.xlu0 %527
    %v530 = vsel %vm140, %v513, %v432
    %v531 = vsel %vm140, %v518, %v433
    %v532 = vsel %vm140, %v523, %v434
    %v533 = vsel %vm140, %v528, %v435
    %535 = vset.pattern.permute.xlu0 2
    %536 = vperm.xlu0 %535, %v452
    %v537 = vpop.permute.xlu0 %536
    %540 = vset.pattern.permute.xlu0 2
    %541 = vperm.xlu0 %540, %v453
    %v542 = vpop.permute.xlu0 %541
    %545 = vset.pattern.permute.xlu0 2
    %546 = vperm.xlu0 %545, %v454
    %v547 = vpop.permute.xlu0 %546
    %550 = vset.pattern.permute.xlu0 2
    %551 = vperm.xlu0 %550, %v455
    %v552 = vpop.permute.xlu0 %551
    %v554 = vsel %vm139, %v537, %v530
    %v555 = vsel %vm139, %v542, %v531
    %v556 = vsel %vm139, %v547, %v532
    %v557 = vsel %vm139, %v552, %v533
    %s558 = scalar_lea.vmem %s2, 8
    %v559 = vld [vmem:[%s558] sm:$0xff]
    %v560 = vadd.f32 %v559, %v41
    %v561 = vadd.f32 %v559, %v46
    %v562 = vadd.f32 %v559, %v51
    %v563 = vadd.f32 %v559, %v56
    %v565 = vsel %vm194, %v554, 0
    %v568 = vsel %vm194, %v555, 0
    %v571 = vsel %vm194, %v556, 0
    %v574 = vsel %vm194, %v557, 0
    %576 = vmatprep.subr.mxu0 0.0
    %577 = vmatpush1.msra.mxu0 0.0
    %578 = vmatprep.subr.mxu0 0.0
    %579 = vmatpush1.msra.mxu0 0.0
    %580 = vmatprep.subr.mxu0 0.0
    %581 = vmatpush1.msra.mxu0 0.0
    %582 = vmatprep.subr.mxu0 0.0
    %583 = vmatpush1.msra.mxu0 0.0
    %584 = vmatprep.subr.mxu0 0.0
    %585 = vmatpush1.msra.mxu0 0.0
    %586 = vmatprep.subr.mxu0 0.0
    %587 = vmatpush1.msra.mxu0 0.0
    %588 = vmatprep.subr.mxu0 0.0
    %589 = vmatpush1.msra.mxu0 0.0
    %590 = vmatprep.subr.mxu0 0.0
    %591 = vmatpush1.msra.mxu0 0.0
    %592 = vmatprep.subr.mxu0 0.0
    %593 = vmatpush1.msra.mxu0 0.0
    %594 = vmatprep.subr.mxu0 0.0
    %595 = vmatpush1.msra.mxu0 0.0
    %596 = vmatprep.subr.mxu0 0.0
    %597 = vmatpush1.msra.mxu0 0.0
    %598 = vmatprep.subr.mxu0 0.0
    %599 = vmatpush1.msra.mxu0 0.0
    %600 = vmatprep.subr.mxu0 0.0
    %601 = vmatpush1.msra.mxu0 0.0
    %602 = vmatprep.subr.mxu0 0.0
    %603 = vmatpush1.msra.mxu0 0.0
    %604 = vmatprep.subr.mxu0 0.0
    %605 = vmatpush1.msra.mxu0 0.0
    %606 = vmatprep.subr.mxu0 0.0
    %607 = vmatpush1.msra.mxu0 %v34
    %608 = vmatprep.subr.mxu0 0.0
    %609 = vmatpush2.msra.mxu0 0.0
    %610 = vmatprep.subr.mxu0 0.0
    %611 = vmatpush2.msra.mxu0 0.0
    %612 = vmatprep.subr.mxu0 0.0
    %613 = vmatpush2.msra.mxu0 0.0
    %614 = vmatprep.subr.mxu0 0.0
    %615 = vmatpush2.msra.mxu0 0.0
    %616 = vmatprep.subr.mxu0 0.0
    %617 = vmatpush2.msra.mxu0 0.0
    %618 = vmatprep.subr.mxu0 0.0
    %619 = vmatpush2.msra.mxu0 0.0
    %620 = vmatprep.subr.mxu0 0.0
    %621 = vmatpush2.msra.mxu0 0.0
    %622 = vmatprep.subr.mxu0 0.0
    %623 = vmatpush2.msra.mxu0 0.0
    %624 = vmatprep.subr.mxu0 0.0
    %625 = vmatpush2.msra.mxu0 0.0
    %626 = vmatprep.subr.mxu0 0.0
    %627 = vmatpush2.msra.mxu0 0.0
    %628 = vmatprep.subr.mxu0 0.0
    %629 = vmatpush2.msra.mxu0 0.0
    %630 = vmatprep.subr.mxu0 0.0
    %631 = vmatpush2.msra.mxu0 0.0
    %632 = vmatprep.subr.mxu0 0.0
    %633 = vmatpush2.msra.mxu0 0.0
    %634 = vmatprep.subr.mxu0 0.0
    %635 = vmatpush2.msra.mxu0 0.0
    %636 = vmatprep.subr.mxu0 0.0
    %637 = vmatpush2.msra.mxu0 0.0
    %638 = vmatprep.subr.mxu0 0.0
    %639 = vmatpush2.msra.mxu0 0.0
    %640 = vmatprep.mubr.f32.mxu0 0.0
    %641 = vmatmul.mubr.f32.gmra.mxu0 %v565
    %v642 = vpop.f32.mrf.mxu0
    %v643 = vadd.f32 %v560, %v642
    %v644 = vpop.f32.mrf.mxu0
    %645 = vmatprep.mubr.f32.mxu0 0.0
    %646 = vmatmul.mubr.f32.gmra.mxu0 %v568
    %v647 = vpop.f32.mrf.mxu0
    %v648 = vadd.f32 %v561, %v647
    %v649 = vpop.f32.mrf.mxu0
    %650 = vmatprep.mubr.f32.mxu0 0.0
    %651 = vmatmul.mubr.f32.gmra.mxu0 %v571
    %v652 = vpop.f32.mrf.mxu0
    %v653 = vadd.f32 %v562, %v652
    %v654 = vpop.f32.mrf.mxu0
    %655 = vmatprep.mubr.f32.mxu0 0.0
    %656 = vmatmul.mubr.f32.gmra.mxu0 %v574
    %v657 = vpop.f32.mrf.mxu0
    %v658 = vadd.f32 %v563, %v657
    %v659 = vpop.f32.mrf.mxu0
    %660 = vdwg.mxu0
    %v661 = vmax.f32 %v643, 0.0
    %v662 = vmax.f32 %v648, 0.0
    %v663 = vmax.f32 %v653, 0.0
    %v664 = vmax.f32 %v658, 0.0
    %v665 = vmul.f32 %v661, %v299
    %v666 = vmul.f32 %v662, %v299
    %v667 = vmul.f32 %v663, %v299
    %v668 = vmul.f32 %v664, %v299
    %v669 = vsel %vm304, %v665, 0.0
    %670 = vadd.xlane.f32.xlu0 %v669
    %v671 = vpop.xlane.xlu0 %670
    %v672 = vsel %vm304, %v666, 0.0
    %673 = vadd.xlane.f32.xlu0 %v672
    %v674 = vpop.xlane.xlu0 %673
    %v675 = vsel %vm304, %v667, 0.0
    %676 = vadd.xlane.f32.xlu0 %v675
    %v677 = vpop.xlane.xlu0 %676
    %v678 = vsel %vm304, %v668, 0.0
    %679 = vadd.xlane.f32.xlu0 %v678
    %v680 = vpop.xlane.xlu0 %679
    %v681 = vadd.f32 %v671, %v317
    %v682 = vadd.f32 %v674, %v317
    %v683 = vadd.f32 %v677, %v317
    %v684 = vadd.f32 %v680, %v317
    %685 = vrot.lane.b32.xlu0 %v432, 1
    %v686 = vpop.permute.xlu0 %685
    %687 = vrot.lane.b32.xlu0 %v433, 1
    %v688 = vpop.permute.xlu0 %687
    %689 = vrot.lane.b32.xlu0 %v434, 1
    %v690 = vpop.permute.xlu0 %689
    %691 = vrot.lane.b32.xlu0 %v435, 1
    %v692 = vpop.permute.xlu0 %691
    %v697 = vsub.f32 %v432, %v686
    %v698 = vsub.f32 %v433, %v688
    %v699 = vsub.f32 %v434, %v690
    %v700 = vsub.f32 %v435, %v692
    %v701 = vsub.f32 %v432, %v681
    %v702 = vsub.f32 %v433, %v682
    %v703 = vsub.f32 %v434, %v683
    %v704 = vsub.f32 %v435, %v684
    %709 = vrot.lane.b32.xlu0 %v697, 126
    %v710 = vpop.permute.xlu0 %709
    %711 = vrot.lane.b32.xlu0 %v698, 126
    %v712 = vpop.permute.xlu0 %711
    %713 = vrot.lane.b32.xlu0 %v699, 126
    %v714 = vpop.permute.xlu0 %713
    %715 = vrot.lane.b32.xlu0 %v700, 126
    %v716 = vpop.permute.xlu0 %715
    %v721 = vmul.f32 %v701, %v710
    %v722 = vmul.f32 %v702, %v712
    %v723 = vmul.f32 %v703, %v714
    %v724 = vmul.f32 %v704, %v716
    %v725 = vmul.f32 %v721, %v721
    %v726 = vmul.f32 %v722, %v722
    %v727 = vmul.f32 %v723, %v723
    %v728 = vmul.f32 %v724, %v724
    %733 = vrot.lane.b32.xlu0 %v725, 127
    %v734 = vpop.permute.xlu0 %733
    %735 = vrot.lane.b32.xlu0 %v726, 127
    %v736 = vpop.permute.xlu0 %735
    %737 = vrot.lane.b32.xlu0 %v727, 127
    %v738 = vpop.permute.xlu0 %737
    %739 = vrot.lane.b32.xlu0 %v728, 127
    %v740 = vpop.permute.xlu0 %739
    %v745 = vsel %vm382, %v734, 0.0
    %v746 = vsel %vm382, %v736, 0.0
    %v747 = vadd.f32 %v745, %v746
    %v748 = vsel %vm382, %v738, 0.0
    %v749 = vadd.f32 %v747, %v748
    %v750 = vsel %vm382, %v740, 0.0
    %v751 = vadd.f32 %v749, %v750
    %752 = vadd.xlane.f32.xlu0 %v751
    %v753 = vpop.xlane.xlu0 %752
    %v754 = vrot.slane %v753, 4
    %v755 = vadd.f32 %v753, %v754
    %v756 = vrot.slane %v755, 2
    %v757 = vadd.f32 %v755, %v756
    %v758 = vrot.slane %v757, 1
    %v759 = vadd.f32 %v757, %v758
    %s760 = vtos %v759
    %s761 = sadd.f32 %s399, %s760
    %762 = vrot.lane.b32.xlu0 %v697, 125
    %v763 = vpop.permute.xlu0 %762
    %764 = vrot.lane.b32.xlu0 %v698, 125
    %v765 = vpop.permute.xlu0 %764
    %766 = vrot.lane.b32.xlu0 %v699, 125
    %v767 = vpop.permute.xlu0 %766
    %768 = vrot.lane.b32.xlu0 %v700, 125
    %v769 = vpop.permute.xlu0 %768
    %v774 = vsel %vm382, %v763, 0.0
    %v775 = vsel %vm382, %v765, 0.0
    %v776 = vadd.f32 %v774, %v775
    %v777 = vsel %vm382, %v767, 0.0
    %v778 = vadd.f32 %v776, %v777
    %v779 = vsel %vm382, %v769, 0.0
    %v780 = vadd.f32 %v778, %v779
    %781 = vadd.xlane.f32.xlu0 %v780
    %v782 = vpop.xlane.xlu0 %781
    %v783 = vrot.slane %v782, 4
    %v784 = vadd.f32 %v782, %v783
    %v785 = vrot.slane %v784, 2
    %v786 = vadd.f32 %v784, %v785
    %v787 = vrot.slane %v786, 1
    %v788 = vadd.f32 %v786, %v787
    %s789 = vtos %v788
    %s790 = sadd.f32 %s428, %s789
    %p791 = scmp.gt.f32.partialorder %s790, 0.0
    %s792 = scalar_select %p791, %s790, 1.0
    %v793 = vstv %s792
    %v794 = vrcp.pop %v793
    %s795 = vtos %v794
    %s796 = smul.f32 %s761, %s795
    %v797 = vstv %s796
    %vm798 = vcmask 0
    %799 = vst.msk [vmem:[#allocation5] sm:$0x1] %vm798, %v797
    // Predicated region
    $region26: #{base_diff_model_forward.37} parent=1 // pred_check
      _
    $region27: #{base_diff_model_forward.37} parent=1 // pred_check_branch
      %801 = sbr.rel (0) target = $region29
    $region28: #{base_diff_model_forward.37} parent=1 // pred_region
      %s803 = ssub.s32 16, 16
      %804 = vsyncadd [#allocation3], %s803
      %s806 = sshll.u32 [#allocation5], 4
      %s807 = int_to_ptr.vmem [resolvable:$true] %s806
      %809 = dma.vmem_to_hbm [thread:$0]  %s807, 16, %s5, [#allocation3]
    $region29: #{base_diff_model_forward.37} parent=1 // pred_fallthru
      _
    // Predicated region
    $region30: #{base_diff_model_forward.37} parent=1 // pred_check
      _
    $region31: #{base_diff_model_forward.37} parent=1 // pred_check_branch
      %811 = sbr.rel (0) target = $region33
    $region32: #{base_diff_model_forward.37} parent=1 // pred_region
      %812 = dma.done [#allocation3], 16
    $region33: #{base_diff_model_forward.37} parent=1 // pred_fallthru
      _
    %813 = vsyncpa [#allocation3], 1
    %814 = vsyncpa [#allocation4], 1

</llo_original>
